<compile_context>
chip_gen: v5e
topology: v5e:2x2
jax: 0.10.0
libtpu: 0.0.40
codegen_flags: <defaults>
</compile_context>

<pallas_src>
import jax
import jax.numpy as jnp
from jax.experimental import pallas as pl
from jax.experimental.pallas import tpu as pltpu

# cfg.linear analogue (hidden layer sizes), deterministic.
CFG_LINEAR = (32, 64)

LANE = 128
DEFAULT_TILE_B = 16384  # batch rows per grid step (lane-aligned, ~9 MiB/step VMEM)


def _round_up(n, m):
    return ((n + m - 1) // m) * m


def _mlp_kernel(xT_ref, w1_ref, b1_ref, w2_ref, b2_ref, w3_ref, b3_ref, oT_ref):
    # Transposed layout: activations are [features, TILE_B] (batch on lanes),
    # weights are [out_features, in_features] (torch layout): h = W @ x^T + b.
    # bf16 operands into the MXU, f32 accumulation, f32 bias/ReLU epilogue.
    xT = xT_ref[...]                                                    # bf16 [in, TB]
    h1 = jnp.dot(w1_ref[...], xT, preferred_element_type=jnp.float32)  # f32 [H1, TB]
    h1 = jnp.maximum(h1 + b1_ref[...], 0.0).astype(jnp.bfloat16)
    h2 = jnp.dot(w2_ref[...], h1, preferred_element_type=jnp.float32)  # f32 [H2, TB]
    h2 = jnp.maximum(h2 + b2_ref[...], 0.0).astype(jnp.bfloat16)
    y = jnp.dot(w3_ref[...], h2, preferred_element_type=jnp.float32)   # f32 [out,TB]
    y = y + b3_ref[...]
    oT_ref[...] = y.astype(oT_ref.dtype)


def _resident_spec(shape, index_map):
    # Constant-index blocks never re-fetch; single-buffer them if supported.
    try:
        return pl.BlockSpec(shape, index_map, pipeline_mode=pl.Buffered(1))
    except (AttributeError, TypeError):
        return pl.BlockSpec(shape, index_map)


def mlp_forward(x, params, tile_b=DEFAULT_TILE_B):
    """Fused 3-layer MLP.

    x:      [B, input_size] float32
    params: torch-layout f32 weights/biases:
            w1 [H1, in], b1 [H1, 1], w2 [H2, H1], b2 [H2, 1],
            w3 [out, H2], b3 [out, 1]
    returns [B, output_size] float32
    """
    w1, b1 = params["w1"], params["b1"]
    w2, b2 = params["w2"], params["b2"]
    w3, b3 = params["w3"], params["b3"]

    B, in_size = x.shape
    h1_size = w1.shape[0]
    h2_size = w2.shape[0]
    out_size = w3.shape[0]

    # --- batch tiling (batch lives on the 128-lane axis) -------------------
    if B <= tile_b:
        if B >= 2 * LANE:
            # Split into >=2 lane-aligned tiles so both v7x TensorCores work.
            tb = _round_up(pl.cdiv(B, 2), LANE)
        else:
            tb = B  # single block equal to the full array dim (always legal)
    else:
        tb = tile_b  # multiple of 128; ragged tail block is masked by Pallas
    grid = (pl.cdiv(B, tb),)

    # Layout plumbing + one-time bf16 casts (fused by XLA into the transpose).
    xT = jnp.transpose(x).astype(jnp.bfloat16)        # [in, B] bf16
    w1b = w1.astype(jnp.bfloat16)
    w2b = w2.astype(jnp.bfloat16)
    w3b = w3.astype(jnp.bfloat16)

    const2 = lambda i: (0, 0)

    matmul_macs = in_size * h1_size + h1_size * h2_size + h2_size * out_size
    cost = pl.CostEstimate(
        flops=2 * B * matmul_macs,
        bytes_accessed=B * in_size * 2 + B * out_size * 4
        + 2 * matmul_macs + 4 * (h1_size + h2_size + out_size),
        transcendentals=0,
    )

    yT = pl.pallas_call(
        _mlp_kernel,
        out_shape=jax.ShapeDtypeStruct((out_size, B), x.dtype),
        grid=grid,
        in_specs=[
            pl.BlockSpec((in_size, tb), lambda i: (0, i)),        # x^T tile (pipelined)
            _resident_spec((h1_size, in_size), const2),           # weights/biases stay
            _resident_spec((h1_size, 1), const2),                 # VMEM-resident,
            _resident_spec((h2_size, h1_size), const2),           # single-buffered
            _resident_spec((h2_size, 1), const2),
            _resident_spec((out_size, h2_size), const2),
            _resident_spec((out_size, 1), const2),
        ],
        out_specs=pl.BlockSpec((out_size, tb), lambda i: (0, i)),
        compiler_params=pltpu.CompilerParams(
            dimension_semantics=("parallel",),  # 2 TCs on v7x split the batch
        ),
        cost_estimate=cost,
    )(xT, w1b, b1, w2b, b2, w3b, b3)

    return jnp.transpose(yT)  # [B, out]


def init_params(key, input_size, output_size):
    """Deterministic PyTorch-like init. Weights stored in torch layout [out, in]."""
    h1, h2 = CFG_LINEAR
    dims = [(input_size, h1), (h1, h2), (h2, output_size)]
    params = {}
    for idx, (fin, fout) in enumerate(dims, start=1):
        key, kw, kb = jax.random.split(key, 3)
        bound = 1.0 / jnp.sqrt(jnp.float32(fin))
        params[f"w{idx}"] = jax.random.uniform(
            kw, (fout, fin), jnp.float32, minval=-bound, maxval=bound
        )
        params[f"b{idx}"] = jax.random.uniform(
            kb, (fout, 1), jnp.float32, minval=-bound, maxval=bound
        )
    return params


def mlp_reference(x, params):
    # Pure f32 reference (torch nn.Linear semantics).
    h1 = jnp.maximum(x @ params["w1"].T + params["b1"].T, 0.0)
    h2 = jnp.maximum(h1 @ params["w2"].T + params["b2"].T, 0.0)
    return h2 @ params["w3"].T + params["b3"].T


if __name__ == "__main__":
    input_size = 16
    output_size = 8
    batch = 8

    key = jax.random.PRNGKey(0)
    key, kx = jax.random.split(key)
    x = jax.random.normal(kx, (batch, input_size), jnp.float32)
    params = init_params(key, input_size, output_size)

    out = mlp_forward(x, params)
    out = jax.block_until_ready(out)

    ref = mlp_reference(x, params)
    assert out.shape == (batch, output_size)
    # bf16 MXU operands (f32 accumulate): compare against the f32 reference
    # with a tolerance appropriate for bfloat16 operand rounding.
    assert jnp.allclose(out, ref, atol=5e-2, rtol=5e-2), (
        float(jnp.max(jnp.abs(out - ref)))
    )

    print("KERNEL_OK")
</pallas_src>

<mosaic_0001>
module attributes {stable_mosaic.version = 11 : i64} {
  func.func @_mlp_kernel(%arg0: i32, %arg1: memref<16x8xbf16, #tpu.memory_space<vmem>>, %arg2: memref<32x16xbf16, #tpu.memory_space<vmem>>, %arg3: memref<32x1xf32, #tpu.memory_space<vmem>>, %arg4: memref<64x32xbf16, #tpu.memory_space<vmem>>, %arg5: memref<64x1xf32, #tpu.memory_space<vmem>>, %arg6: memref<8x64xbf16, #tpu.memory_space<vmem>>, %arg7: memref<8x1xf32, #tpu.memory_space<vmem>>, %arg8: memref<8x8xf32, #tpu.memory_space<vmem>>) attributes {dimension_semantics = [#tpu.dimension_semantics<parallel>], iteration_bounds = array<i64: 1>, scalar_prefetch = 0 : i64, scratch_operands = 0 : i64, tpu.core_type = #tpu.core_type<tc>, window_params = [{transform_indices = @transform_0, window_bounds = array<i64: 16, 8>}, {pipeline_mode = #tpu.pipeline_mode<synchronous>, transform_indices = @transform_1, window_bounds = array<i64: 32, 16>}, {pipeline_mode = #tpu.pipeline_mode<synchronous>, transform_indices = @transform_2, window_bounds = array<i64: 32, 1>}, {pipeline_mode = #tpu.pipeline_mode<synchronous>, transform_indices = @transform_3, window_bounds = array<i64: 64, 32>}, {pipeline_mode = #tpu.pipeline_mode<synchronous>, transform_indices = @transform_4, window_bounds = array<i64: 64, 1>}, {pipeline_mode = #tpu.pipeline_mode<synchronous>, transform_indices = @transform_5, window_bounds = array<i64: 8, 64>}, {pipeline_mode = #tpu.pipeline_mode<synchronous>, transform_indices = @transform_6, window_bounds = array<i64: 8, 1>}, {transform_indices = @transform_7, window_bounds = array<i64: 8, 8>}]} {
    %c0 = arith.constant 0 : index
    %c0_0 = arith.constant 0 : index
    %0 = vector.load %arg1[%c0, %c0_0] : memref<16x8xbf16, #tpu.memory_space<vmem>>, vector<16x8xbf16>
    %c0_1 = arith.constant 0 : index
    %c0_2 = arith.constant 0 : index
    %1 = vector.load %arg2[%c0_1, %c0_2] : memref<32x16xbf16, #tpu.memory_space<vmem>>, vector<32x16xbf16>
    %cst = arith.constant dense<0.000000e+00> : vector<32x8xf32>
    %2 = tpu.matmul %1, %0, %cst {dimension_numbers = #tpu.dot_dimension_numbers<[1], [0], [0], [1], [0, 0, 1, 1], [], []>} : vector<32x16xbf16>, vector<16x8xbf16>, vector<32x8xf32> -> vector<32x8xf32>
    %c0_3 = arith.constant 0 : index
    %c0_4 = arith.constant 0 : index
    %3 = vector.load %arg3[%c0_3, %c0_4] : memref<32x1xf32, #tpu.memory_space<vmem>>, vector<32x1xf32>
    %4 = vector.broadcast %3 : vector<32x1xf32> to vector<32x8xf32>
    %5 = arith.addf %2, %4 : vector<32x8xf32>
    %cst_5 = arith.constant 0.000000e+00 : f32
    %6 = vector.broadcast %cst_5 : f32 to vector<32x8xf32>
    %7 = arith.maximumf %5, %6 : vector<32x8xf32>
    %8 = arith.truncf %7 : vector<32x8xf32> to vector<32x8xbf16>
    %c0_6 = arith.constant 0 : index
    %c0_7 = arith.constant 0 : index
    %9 = vector.load %arg4[%c0_6, %c0_7] : memref<64x32xbf16, #tpu.memory_space<vmem>>, vector<64x32xbf16>
    %cst_8 = arith.constant dense<0.000000e+00> : vector<64x8xf32>
    %10 = tpu.matmul %9, %8, %cst_8 {dimension_numbers = #tpu.dot_dimension_numbers<[1], [0], [0], [1], [0, 0, 1, 1], [], []>} : vector<64x32xbf16>, vector<32x8xbf16>, vector<64x8xf32> -> vector<64x8xf32>
    %c0_9 = arith.constant 0 : index
    %c0_10 = arith.constant 0 : index
    %11 = vector.load %arg5[%c0_9, %c0_10] : memref<64x1xf32, #tpu.memory_space<vmem>>, vector<64x1xf32>
    %12 = vector.broadcast %11 : vector<64x1xf32> to vector<64x8xf32>
    %13 = arith.addf %10, %12 : vector<64x8xf32>
    %cst_11 = arith.constant 0.000000e+00 : f32
    %14 = vector.broadcast %cst_11 : f32 to vector<64x8xf32>
    %15 = arith.maximumf %13, %14 : vector<64x8xf32>
    %16 = arith.truncf %15 : vector<64x8xf32> to vector<64x8xbf16>
    %c0_12 = arith.constant 0 : index
    %c0_13 = arith.constant 0 : index
    %17 = vector.load %arg6[%c0_12, %c0_13] : memref<8x64xbf16, #tpu.memory_space<vmem>>, vector<8x64xbf16>
    %cst_14 = arith.constant dense<0.000000e+00> : vector<8x8xf32>
    %18 = tpu.matmul %17, %16, %cst_14 {dimension_numbers = #tpu.dot_dimension_numbers<[1], [0], [0], [1], [0, 0, 1, 1], [], []>} : vector<8x64xbf16>, vector<64x8xbf16>, vector<8x8xf32> -> vector<8x8xf32>
    %c0_15 = arith.constant 0 : index
    %c0_16 = arith.constant 0 : index
    %19 = vector.load %arg7[%c0_15, %c0_16] : memref<8x1xf32, #tpu.memory_space<vmem>>, vector<8x1xf32>
    %20 = vector.broadcast %19 : vector<8x1xf32> to vector<8x8xf32>
    %21 = arith.addf %18, %20 : vector<8x8xf32>
    %c0_17 = arith.constant 0 : index
    %c0_18 = arith.constant 0 : index
    %22 = vector.load %arg8[%c0_17, %c0_18] : memref<8x8xf32, #tpu.memory_space<vmem>>, vector<8x8xf32>
    tpu.vector_store %arg8[%c0_17, %c0_18], %21 {strides = array<i32>} : memref<8x8xf32, #tpu.memory_space<vmem>>, vector<8x8xf32>,
    return
  }
  func.func @transform_0(%arg0: i32) -> (i32, i32) {
    %c0_i32 = arith.constant 0 : i32
    %c0_i32_0 = arith.constant 0 : i32
    return %c0_i32, %arg0 : i32, i32
  }
  func.func @transform_1(%arg0: i32) -> (i32, i32) {
    %c0_i32 = arith.constant 0 : i32
    %c0_i32_0 = arith.constant 0 : i32
    %c0_i32_1 = arith.constant 0 : i32
    return %c0_i32, %c0_i32_0 : i32, i32
  }
  func.func @transform_2(%arg0: i32) -> (i32, i32) {
    %c0_i32 = arith.constant 0 : i32
    %c0_i32_0 = arith.constant 0 : i32
    %c0_i32_1 = arith.constant 0 : i32
    return %c0_i32, %c0_i32_0 : i32, i32
  }
  func.func @transform_3(%arg0: i32) -> (i32, i32) {
    %c0_i32 = arith.constant 0 : i32
    %c0_i32_0 = arith.constant 0 : i32
    %c0_i32_1 = arith.constant 0 : i32
    return %c0_i32, %c0_i32_0 : i32, i32
  }
  func.func @transform_4(%arg0: i32) -> (i32, i32) {
    %c0_i32 = arith.constant 0 : i32
    %c0_i32_0 = arith.constant 0 : i32
    %c0_i32_1 = arith.constant 0 : i32
    return %c0_i32, %c0_i32_0 : i32, i32
  }
  func.func @transform_5(%arg0: i32) -> (i32, i32) {
    %c0_i32 = arith.constant 0 : i32
    %c0_i32_0 = arith.constant 0 : i32
    %c0_i32_1 = arith.constant 0 : i32
    return %c0_i32, %c0_i32_0 : i32, i32
  }
  func.func @transform_6(%arg0: i32) -> (i32, i32) {
    %c0_i32 = arith.constant 0 : i32
    %c0_i32_0 = arith.constant 0 : i32
    %c0_i32_1 = arith.constant 0 : i32
    return %c0_i32, %c0_i32_0 : i32, i32
  }
  func.func @transform_7(%arg0: i32) -> (i32, i32) {
    %c0_i32 = arith.constant 0 : i32
    %c0_i32_0 = arith.constant 0 : i32
    return %c0_i32, %arg0 : i32, i32
  }
}

</mosaic_0001>

<llo_original>
// kernel: tpu_custom_call.1
$region0: #{tpu_custom_call.1}
  #allocation0 [shape = 'u32[]', space=smem, size = 0x4, offset = 0x4, fixed_abs, tag = 'smem constant byte address 0x4 - core index']
  #allocation1 [shape = 'u32[72,128]{1,0:T(1,128)}', space=vmem, size = 0x9000, scoped, tag = 'internal scratch']
  %s0 = inlined_call_operand.vmem [shape: bf16[16,8], index: 0, kind: input, shape index: {}]
  %s1 = inlined_call_operand.vmem [shape: bf16[32,16], index: 1, kind: input, shape index: {}]
  %s2 = inlined_call_operand.vmem [shape: f32[32,1], index: 2, kind: input, shape index: {}]
  %s3 = inlined_call_operand.vmem [shape: bf16[64,32], index: 3, kind: input, shape index: {}]
  %s4 = inlined_call_operand.vmem [shape: f32[64,1], index: 4, kind: input, shape index: {}]
  %s5 = inlined_call_operand.vmem [shape: bf16[8,64], index: 5, kind: input, shape index: {}]
  %s6 = inlined_call_operand.vmem [shape: f32[8,1], index: 6, kind: input, shape index: {}]
  %s7 = inlined_call_operand.hbm [shape: f32[8,8], index: 7, kind: output, shape index: {}]
  %s8 = sld [smem:[#allocation0]]
  $region38: #{tpu_custom_call.1} parent=0
    _
  %s10 = ssub.s32 1, %s8
  %s11 = scalar_select 0, %s10, %s8
  $region1: #{tpu_custom_call.1} parent=0
    #allocation2 [shape = 'u8[4096]{0}', space=vmem, size = 0x1000, scoped, tag = 'output window, operand 0, single buffered']
    #allocation3 [shape = 's32[1]{0}', space=sflag, size = 0x4, scoped, tag = 'scoped memory for tpu_custom_call.1']
    %12 = vsyncpa [#allocation3], 0
    // Predicated region
    $region2: #{tpu_custom_call.1} parent=1 // pred_check
      _
    $region3: #{tpu_custom_call.1} parent=1 // pred_check_branch
      %14 = sbr.rel (0) target = $region5
    $region4: #{tpu_custom_call.1} parent=1 // pred_region
      _
    $region5: #{tpu_custom_call.1} parent=1 // pred_fallthru
      _
    // Predicated region
    $region6: #{tpu_custom_call.1} parent=1 // pred_check
      _
    $region7: #{tpu_custom_call.1} parent=1 // pred_check_branch
      %16 = sbr.rel (0) target = $region9
    $region8: #{tpu_custom_call.1} parent=1 // pred_region
      _
    $region9: #{tpu_custom_call.1} parent=1 // pred_fallthru
      _
    // Predicated region
    $region10: #{tpu_custom_call.1} parent=1 // pred_check
      _
    $region11: #{tpu_custom_call.1} parent=1 // pred_check_branch
      %18 = sbr.rel (0) target = $region13
    $region12: #{tpu_custom_call.1} parent=1 // pred_region
      _
    $region13: #{tpu_custom_call.1} parent=1 // pred_fallthru
      _
    // Predicated region
    $region14: #{tpu_custom_call.1} parent=1 // pred_check
      _
    $region15: #{tpu_custom_call.1} parent=1 // pred_check_branch
      %20 = sbr.rel (0) target = $region17
    $region16: #{tpu_custom_call.1} parent=1 // pred_region
      _
    $region17: #{tpu_custom_call.1} parent=1 // pred_fallthru
      _
    // Predicated region
    $region18: #{tpu_custom_call.1} parent=1 // pred_check
      _
    $region19: #{tpu_custom_call.1} parent=1 // pred_check_branch
      %22 = sbr.rel (0) target = $region21
    $region20: #{tpu_custom_call.1} parent=1 // pred_region
      _
    $region21: #{tpu_custom_call.1} parent=1 // pred_fallthru
      _
    // Predicated region
    $region22: #{tpu_custom_call.1} parent=1 // pred_check
      _
    $region23: #{tpu_custom_call.1} parent=1 // pred_check_branch
      %24 = sbr.rel (0) target = $region25
    $region24: #{tpu_custom_call.1} parent=1 // pred_region
      _
    $region25: #{tpu_custom_call.1} parent=1 // pred_fallthru
      _
    // Predicated region
    $region26: #{tpu_custom_call.1} parent=1 // pred_check
      _
    $region27: #{tpu_custom_call.1} parent=1 // pred_check_branch
      %26 = sbr.rel (0) target = $region29
    $region28: #{tpu_custom_call.1} parent=1 // pred_region
      _
    $region29: #{tpu_custom_call.1} parent=1 // pred_fallthru
      _
    %v28 = vld [vmem:[%s0] sm:$0xf]
    %v29 = vld [vmem:[%s0 + $0x4] sm:$0xf]
    %v30 = vld [vmem:[%s1] sm:$0xf]
    %v31 = vld [vmem:[%s1 + $0x4] sm:$0xf]
    %v32 = vld [vmem:[%s1 + $0x8] sm:$0xf]
    %v33 = vld [vmem:[%s1 + $0xc] sm:$0xf]
    %v34 = vld [vmem:[%s2] sm:$0xff]
    %v35 = vld [vmem:[%s2 + $0x8] sm:$0xff]
    %v36 = vld [vmem:[%s2 + $0x10] sm:$0xff]
    %v37 = vld [vmem:[%s2 + $0x18] sm:$0xff]
    %39 = vset.pattern.permute.xlu0 0
    %40 = vperm.xlu0 %39, %v34
    %v41 = vpop.permute.xlu0 %40
    %44 = vset.pattern.permute.xlu0 0
    %45 = vperm.xlu0 %44, %v35
    %v46 = vpop.permute.xlu0 %45
    %49 = vset.pattern.permute.xlu0 0
    %50 = vperm.xlu0 %49, %v36
    %v51 = vpop.permute.xlu0 %50
    %54 = vset.pattern.permute.xlu0 0
    %55 = vperm.xlu0 %54, %v37
    %v56 = vpop.permute.xlu0 %55
    %v62 = vunpack.c.l.b16 %v30
    %v63 = vunpack.c.l.b16 %v31
    %v64 = vunpack.c.l.b16 %v32
    %v65 = vunpack.c.l.b16 %v33
    %v66 = vpack.c.b16 %v63, %v62
    %v67 = vpack.c.b16 %v65, %v64
    %v70 = vunpack.c.l.b16 %v28
    %v71 = vunpack.c.l.b16 %v29
    %v72 = vpack.c.b16 %v71, %v70
    %vm74 = vcmask 130048
    %v76 = vsel %vm74, %v66, 0
    %v79 = vsel %vm74, %v67, 0
    %81 = vmatpush.bf16.msra.mxu0 0
    %82 = vmatpush.bf16.msra.mxu0 0
    %83 = vmatpush.bf16.msra.mxu0 0
    %84 = vmatpush.bf16.msra.mxu0 0
    %85 = vmatpush.bf16.msra.mxu0 0
    %86 = vmatpush.bf16.msra.mxu0 0
    %87 = vmatpush.bf16.msra.mxu0 0
    %88 = vmatpush.bf16.msra.mxu0 %v72
    %89 = vmatmul.bf16.gmra.mxu0 %v76
    %v90 = vpop.f32.mrf.mxu0
    %v91 = vadd.f32 %v41, %v90
    %v92 = vpop.f32.mrf.mxu0
    %v93 = vadd.f32 %v46, %v92
    %94 = vmatmul.bf16.gmra.mxu0 %v79
    %v95 = vpop.f32.mrf.mxu0
    %v96 = vadd.f32 %v51, %v95
    %v97 = vpop.f32.mrf.mxu0
    %v98 = vadd.f32 %v56, %v97
    %99 = vdwg.mxu0
    %v100 = vmax.f32 %v91, 0.0
    %v101 = vmax.f32 %v93, 0.0
    %v102 = vmax.f32 %v96, 0.0
    %v103 = vmax.f32 %v98, 0.0
    %v104 = vpack.c.bf16 %v101, %v100
    %v105 = vpack.c.bf16 %v103, %v102
    %v106 = vld [vmem:[%s3] sm:$0xf]
    %v107 = vld [vmem:[%s3 + $0x4] sm:$0xf]
    %v108 = vld [vmem:[%s3 + $0x8] sm:$0xf]
    %v109 = vld [vmem:[%s3 + $0xc] sm:$0xf]
    %v110 = vld [vmem:[%s3 + $0x10] sm:$0xf]
    %v111 = vld [vmem:[%s3 + $0x14] sm:$0xf]
    %v112 = vld [vmem:[%s3 + $0x18] sm:$0xf]
    %v113 = vld [vmem:[%s3 + $0x1c] sm:$0xf]
    %v114 = vld [vmem:[%s4] sm:$0xff]
    %v115 = vld [vmem:[%s4 + $0x8] sm:$0xff]
    %v116 = vld [vmem:[%s4 + $0x10] sm:$0xff]
    %v117 = vld [vmem:[%s4 + $0x18] sm:$0xff]
    %v118 = vld [vmem:[%s4 + $0x20] sm:$0xff]
    %v119 = vld [vmem:[%s4 + $0x28] sm:$0xff]
    %v120 = vld [vmem:[%s4 + $0x30] sm:$0xff]
    %v121 = vld [vmem:[%s4 + $0x38] sm:$0xff]
    %123 = vset.pattern.permute.xlu0 0
    %124 = vperm.xlu0 %123, %v114
    %v125 = vpop.permute.xlu0 %124
    %128 = vset.pattern.permute.xlu0 0
    %129 = vperm.xlu0 %128, %v115
    %v130 = vpop.permute.xlu0 %129
    %133 = vset.pattern.permute.xlu0 0
    %134 = vperm.xlu0 %133, %v116
    %v135 = vpop.permute.xlu0 %134
    %138 = vset.pattern.permute.xlu0 0
    %139 = vperm.xlu0 %138, %v117
    %v140 = vpop.permute.xlu0 %139
    %143 = vset.pattern.permute.xlu0 0
    %144 = vperm.xlu0 %143, %v118
    %v145 = vpop.permute.xlu0 %144
    %148 = vset.pattern.permute.xlu0 0
    %149 = vperm.xlu0 %148, %v119
    %v150 = vpop.permute.xlu0 %149
    %153 = vset.pattern.permute.xlu0 0
    %154 = vperm.xlu0 %153, %v120
    %v155 = vpop.permute.xlu0 %154
    %158 = vset.pattern.permute.xlu0 0
    %159 = vperm.xlu0 %158, %v121
    %v160 = vpop.permute.xlu0 %159
    %v170 = vunpack.c.l.b16 %v106
    %v171 = vunpack.c.l.b16 %v107
    %v172 = vunpack.c.l.b16 %v108
    %v173 = vunpack.c.l.b16 %v109
    %v174 = vunpack.c.l.b16 %v110
    %v175 = vunpack.c.l.b16 %v111
    %v176 = vunpack.c.l.b16 %v112
    %v177 = vunpack.c.l.b16 %v113
    %v178 = vpack.c.b16 %v171, %v170
    %v179 = vpack.c.b16 %v173, %v172
    %v180 = vpack.c.b16 %v175, %v174
    %v181 = vpack.c.b16 %v177, %v176
    %vm182 = vcmask 261120
    %v184 = vsel %vm182, %v178, 0
    %v187 = vsel %vm182, %v179, 0
    %v190 = vsel %vm182, %v180, 0
    %v193 = vsel %vm182, %v181, 0
    %195 = vmatpush.bf16.msra.mxu0 0
    %196 = vmatpush.bf16.msra.mxu0 0
    %197 = vmatpush.bf16.msra.mxu0 0
    %198 = vmatpush.bf16.msra.mxu0 0
    %199 = vmatpush.bf16.msra.mxu0 0
    %200 = vmatpush.bf16.msra.mxu0 0
    %201 = vmatpush.bf16.msra.mxu0 %v105
    %202 = vmatpush.bf16.msra.mxu0 %v104
    %203 = vmatmul.bf16.gmra.mxu0 %v184
    %v204 = vpop.f32.mrf.mxu0
    %v205 = vadd.f32 %v125, %v204
    %v206 = vpop.f32.mrf.mxu0
    %v207 = vadd.f32 %v130, %v206
    %208 = vmatmul.bf16.gmra.mxu0 %v187
    %v209 = vpop.f32.mrf.mxu0
    %v210 = vadd.f32 %v135, %v209
    %v211 = vpop.f32.mrf.mxu0
    %v212 = vadd.f32 %v140, %v211
    %213 = vmatmul.bf16.gmra.mxu0 %v190
    %v214 = vpop.f32.mrf.mxu0
    %v215 = vadd.f32 %v145, %v214
    %v216 = vpop.f32.mrf.mxu0
    %v217 = vadd.f32 %v150, %v216
    %218 = vmatmul.bf16.gmra.mxu0 %v193
    %v219 = vpop.f32.mrf.mxu0
    %v220 = vadd.f32 %v155, %v219
    %v221 = vpop.f32.mrf.mxu0
    %v222 = vadd.f32 %v160, %v221
    %223 = vdwg.mxu0
    %v224 = vmax.f32 %v205, 0.0
    %v225 = vmax.f32 %v207, 0.0
    %v226 = vmax.f32 %v210, 0.0
    %v227 = vmax.f32 %v212, 0.0
    %v228 = vmax.f32 %v215, 0.0
    %v229 = vmax.f32 %v217, 0.0
    %v230 = vmax.f32 %v220, 0.0
    %v231 = vmax.f32 %v222, 0.0
    %v232 = vpack.c.bf16 %v225, %v224
    %v233 = vpack.c.bf16 %v227, %v226
    %v234 = vpack.c.bf16 %v229, %v228
    %v235 = vpack.c.bf16 %v231, %v230
    %v236 = vld [vmem:[%s5] sm:$0xf]
    %v237 = vld [vmem:[%s6] sm:$0xff]
    %239 = vset.pattern.permute.xlu0 0
    %240 = vperm.xlu0 %239, %v237
    %v241 = vpop.permute.xlu0 %240
    %vm243 = vcmask 523264
    %v245 = vsel %vm243, %v236, 0
    %247 = vmatpush.bf16.msra.mxu0 0
    %248 = vmatpush.bf16.msra.mxu0 0
    %249 = vmatpush.bf16.msra.mxu0 0
    %250 = vmatpush.bf16.msra.mxu0 0
    %251 = vmatpush.bf16.msra.mxu0 %v235
    %252 = vmatpush.bf16.msra.mxu0 %v234
    %253 = vmatpush.bf16.msra.mxu0 %v233
    %254 = vmatpush.bf16.msra.mxu0 %v232
    %255 = vmatmul.bf16.gmra.mxu0 %v245
    %v256 = vpop.f32.mrf.mxu0
    %v257 = vadd.f32 %v241, %v256
    %v258 = vpop.f32.mrf.mxu0
    %259 = vdwg.mxu0
    %vm260 = vcmask 64512
    %261 = vst.msk [vmem:[#allocation2] sm:$0xff] %vm260, %v257
    // Predicated region
    $region30: #{tpu_custom_call.1} parent=1 // pred_check
      _
    $region31: #{tpu_custom_call.1} parent=1 // pred_check_branch
      %263 = sbr.rel (0) target = $region33
    $region32: #{tpu_custom_call.1} parent=1 // pred_region
      %265 = vsyncadd [#allocation3], 0
      %s267 = sshll.u32 [#allocation2], 4
      %s268 = int_to_ptr.vmem [resolvable:$true] %s267
      %s269 = sshll.u32 %s7, 4
      %s270 = int_to_ptr.hbm [resolvable:$true] %s269
      %272 = dma.vmem_to_hbm [thread:$0]  %s268, 128, %s270, [#allocation3]
    $region33: #{tpu_custom_call.1} parent=1 // pred_fallthru
      _
    // Predicated region
    $region34: #{tpu_custom_call.1} parent=1 // pred_check
      _
    $region35: #{tpu_custom_call.1} parent=1 // pred_check_branch
      %274 = sbr.rel (0) target = $region37
    $region36: #{tpu_custom_call.1} parent=1 // pred_region
      %276 = dma.done [#allocation3], 128
    $region37: #{tpu_custom_call.1} parent=1 // pred_fallthru
      _
    %277 = vsyncpa [#allocation3], 1

</llo_original>
